<compile_context>
chip_gen: v7x
topology: tpu7x:2x2x1
jax: 0.10.0
libtpu: 0.0.40
codegen_flags: <defaults>
</compile_context>

<pallas_src>
import numpy as np
import jax
import jax.numpy as jnp
from jax import lax
from jax.experimental import pallas as pl
from jax.experimental.pallas import tpu as pltpu


def _round_up(x, m):
    return (x + m - 1) // m * m


# ----------------------------------------------------------------------------
# Kernel 1: tiled linear feature extraction  (features = x_flat @ W + b)
# grid = (cdiv(N, tm), F_pad/tk); bf16 operands, f32 VMEM accumulator,
# bias added at finalize. D (output dim) is a single full block.
# ----------------------------------------------------------------------------
def _linear_kernel(x_ref, w_ref, b_ref, o_ref, acc_ref):
    k = pl.program_id(1)

    @pl.when(k == 0)
    def _():
        acc_ref[...] = jnp.zeros_like(acc_ref)

    acc_ref[...] += jnp.dot(x_ref[...], w_ref[...],
                            preferred_element_type=jnp.float32)

    @pl.when(k == pl.num_programs(1) - 1)
    def _():
        o_ref[...] = (acc_ref[...] + b_ref[...]).astype(o_ref.dtype)


def extract_features(x_nchw, w_pad, bias, *, tm=256, tk=512):
    """x: (N, C, H, W) -> features (N, D) f32 via flatten + bf16 linear projection."""
    n = x_nchw.shape[0]
    f = int(np.prod(x_nchw.shape[1:]))
    f_pad, d = w_pad.shape
    assert f_pad % tk == 0

    x_flat = jnp.asarray(x_nchw).reshape(n, f).astype(jnp.bfloat16)
    if f != f_pad:
        # K-dim pad must be explicit zeros (W pad rows are zero too).
        x_flat = jnp.zeros((n, f_pad), jnp.bfloat16).at[:, :f].set(x_flat)

    if n >= tm:
        # No row padding: pl.cdiv grid; the boundary block's OOB rows only produce
        # garbage output rows whose store is masked by Pallas.
        tm_eff, n_rows = tm, n
    else:
        tm_eff = _round_up(max(n, 1), 8)
        n_rows = tm_eff
        if n_rows != n:
            x_flat = jnp.zeros((n_rows, f_pad), jnp.bfloat16).at[:n].set(x_flat)

    grid = (pl.cdiv(n_rows, tm_eff), f_pad // tk)
    out = pl.pallas_call(
        _linear_kernel,
        out_shape=jax.ShapeDtypeStruct((n_rows, d), jnp.float32),
        grid_spec=pltpu.PrefetchScalarGridSpec(
            num_scalar_prefetch=0,
            grid=grid,
            in_specs=[
                pl.BlockSpec((tm_eff, tk), lambda i, k: (i, k)),
                pl.BlockSpec((tk, d), lambda i, k: (k, 0)),
                pl.BlockSpec((1, d), lambda i, k: (0, 0)),
            ],
            out_specs=pl.BlockSpec((tm_eff, d), lambda i, k: (i, 0)),
            scratch_shapes=[pltpu.VMEM((tm_eff, d), jnp.float32)],
        ),
        compiler_params=pltpu.CompilerParams(
            dimension_semantics=("parallel", "arbitrary"),
            vmem_limit_bytes=32 * 1024 * 1024,
        ),
    )(x_flat, w_pad, bias)
    return out[:n]


# ----------------------------------------------------------------------------
# Kernel 2: per-test-row sum of the 2 smallest squared-L2 distances to the
# train feature space (faiss IndexFlatL2, n_neighbours=2).
# grid = (n_split, B/tb, Nt_tiles_per_split); train axis streamed ("arbitrary"),
# split / batch axes "parallel". The test operand is passed pre-transposed and
# pre-scaled by -2 ((D, tb) bf16, resident), so the per-tile epilogue is just
# max(trsq + tsq + cross2, 0) followed by the count-trick top-2.
# ----------------------------------------------------------------------------
def _knn2_kernel(featm2_ref, train_ref, trsq_ref, o_ref, tsq_sc, m1_sc, m2_sc):
    ti = pl.program_id(2)

    @pl.when(ti == 0)
    def _():
        # ||test||^2 from the same bf16-rounded features used by the cross-term
        # (featm2 = -2 * te_b  =>  te_b^2 = 0.25 * featm2^2, exact).
        fm = featm2_ref[...].astype(jnp.float32)                  # (D, tb)
        tsq_sc[...] = 0.25 * jnp.sum(fm * fm, axis=0, keepdims=True)
        m1_sc[...] = jnp.full_like(m1_sc, jnp.inf)
        m2_sc[...] = jnp.full_like(m2_sc, jnp.inf)

    # cross2[j, i] = -2 * (train_j . test_i); bf16 operands, f32 accumulation (MXU)
    cross2 = jnp.dot(train_ref[...], featm2_ref[...],
                     preferred_element_type=jnp.float32)          # (tnt, tb)
    # squared L2, clamped at 0 like faiss IndexFlatL2 (trsq stays f32: 1e30 sentinels)
    dist = jnp.maximum(trsq_ref[...] + tsq_sc[...] + cross2, 0.0)

    # per-tile top-2 over the train (sublane) axis -- count trick, tie-robust, no iota
    t1 = jnp.min(dist, axis=0, keepdims=True)                     # (1, tb)
    eq = dist == t1
    t2c = jnp.min(jnp.where(eq, jnp.inf, dist), axis=0, keepdims=True)
    ties = jnp.sum(eq.astype(jnp.float32), axis=0, keepdims=True)
    t2 = jnp.where(ties > 1.0, t1, t2c)

    # merge the tile pair (t1 <= t2) with the running pair (m1 <= m2)
    m1, m2 = m1_sc[...], m2_sc[...]
    m1_sc[...] = jnp.minimum(m1, t1)
    m2_sc[...] = jnp.minimum(jnp.maximum(m1, t1), jnp.minimum(m2, t2))

    @pl.when(ti == pl.num_programs(2) - 1)
    def _():
        # per-split partial (m1, m2) pair, lane-dense
        o_ref[...] = jnp.concatenate([m1_sc[...], m2_sc[...]],
                                     axis=0).reshape(o_ref.shape)


def knn2_forward(feats_test, train_bf16, train_sq, *, bsz, tb, tnt, n_split, ntps):
    d = feats_test.shape[1]
    bsz_pad = _round_up(max(bsz, 1), tb)
    nb = bsz_pad // tb

    # bf16-round the test features, fold the -2 scale (exact in bf16), pre-transpose
    # to a lane-dense (D, bsz_pad) operand so the cross-term needs no in-kernel transpose.
    te_b = feats_test.astype(jnp.bfloat16)
    featm2 = te_b * -2.0                                          # stays bf16, exact
    featm2_t = jnp.zeros((d, bsz_pad), jnp.bfloat16).at[:, :bsz].set(featm2.T)

    out = pl.pallas_call(
        _knn2_kernel,
        out_shape=jax.ShapeDtypeStruct((n_split, nb, 2, tb), jnp.float32),
        grid_spec=pltpu.PrefetchScalarGridSpec(
            num_scalar_prefetch=0,
            grid=(n_split, nb, ntps),
            in_specs=[
                # resident test block (same block across the whole train stream)
                pl.BlockSpec((d, tb), lambda s, bi, ti: (0, bi)),
                # streamed train tile for this split
                pl.BlockSpec((tnt, d), lambda s, bi, ti: (s * ntps + ti, 0)),
                # matching ||train||^2 column (f32)
                pl.BlockSpec((tnt, 1), lambda s, bi, ti: (s * ntps + ti, 0)),
            ],
            out_specs=pl.BlockSpec((1, 1, 2, tb),
                                   lambda s, bi, ti: (s, bi, 0, 0)),
            scratch_shapes=[
                pltpu.VMEM((1, tb), jnp.float32),   # ||test||^2
                pltpu.VMEM((1, tb), jnp.float32),   # running min1
                pltpu.VMEM((1, tb), jnp.float32),   # running min2
            ],
        ),
        compiler_params=pltpu.CompilerParams(
            dimension_semantics=("parallel", "parallel", "arbitrary"),
            vmem_limit_bytes=32 * 1024 * 1024,
        ),
    )(featm2_t, train_bf16, train_sq)

    # Merge per-split sorted pairs (top-2 merge is associative): take the two smallest
    # of the 2*n_split candidates per test row. Tiny host epilogue.
    cand = jnp.transpose(out, (1, 3, 0, 2)).reshape(nb * tb, n_split * 2)
    scores = jnp.sum(jnp.sort(cand, axis=1)[:, :2], axis=1)
    return scores[:bsz]


# ----------------------------------------------------------------------------
# Wrap_Model equivalent
# ----------------------------------------------------------------------------
class WrapModelPallas:
    def __init__(self, w, b, train_images, *, tm=256, tk=512, tb=128,
                 tnt_max=2048, n_split=2):
        w = jnp.asarray(w, jnp.float32)
        f, d = w.shape
        self.f, self.d = f, d
        self.tm, self.tk, self.tb = tm, tk, tb

        # bf16 MXU operands for the backbone projection (f32 accumulation in-kernel)
        f_pad = _round_up(f, tk)
        w_b = w.astype(jnp.bfloat16)
        self.w_pad = (w_b if f == f_pad
                      else jnp.zeros((f_pad, d), jnp.bfloat16).at[:f].set(w_b))
        self.bias = jnp.asarray(b, jnp.float32).reshape(1, d)

        # __init__ of the reference module: extract the train-set feature space
        n = train_images.shape[0]
        feats = extract_features(train_images, self.w_pad, self.bias,
                                 tm=tm, tk=tk)                      # (n, D) f32
        self.train_feature_space = feats                            # parity
        self.mean_train = jnp.mean(feats, axis=0)                   # parity; unused

        # KNN-side constants (hoisted out of forward). Train features are rounded to
        # bf16 once; ||train||^2 is computed from the *rounded* values so it matches
        # the bf16 cross-term (the rounding bias cancels in the distance).
        tr_b = feats.astype(jnp.bfloat16)
        tr_r = tr_b.astype(jnp.float32)
        trsq = jnp.sum(tr_r * tr_r, axis=1, keepdims=True)

        self.n_split = max(1, int(n_split))
        per_split = -(-n // self.n_split)
        self.tnt = min(int(tnt_max), _round_up(max(per_split, 8), 8))
        self.ntps = max(1, -(-per_split // self.tnt))               # tiles per split
        nt_pad = self.n_split * self.ntps * self.tnt

        self.train_bf16 = jax.block_until_ready(
            jnp.zeros((nt_pad, d), jnp.bfloat16).at[:n].set(tr_b))
        # padded rows get a huge norm (f32 only!) so they are never a nearest neighbour
        self.train_sq = jax.block_until_ready(
            jnp.full((nt_pad, 1), 1e30, jnp.float32).at[:n].set(trsq))

    def forward(self, x):
        feats = extract_features(x, self.w_pad, self.bias, tm=self.tm, tk=self.tk)
        return knn2_forward(feats, self.train_bf16, self.train_sq,
                            bsz=x.shape[0], tb=self.tb, tnt=self.tnt,
                            n_split=self.n_split, ntps=self.ntps)


if __name__ == "__main__":
    key = jax.random.PRNGKey(0)
    k_w, k_train, k_test = jax.random.split(key, 3)

    B, C, H, W = 2, 4, 16, 16          # test batch (NCHW)
    N_TRAIN, D = 200, 32               # train-set size (non-multiple of 128), feat dim
    F = C * H * W

    # deterministic synthetic backbone parameters
    w = jax.random.normal(k_w, (F, D), jnp.float32) * 0.02
    b = jnp.zeros((1, D), jnp.float32)

    train_imgs = jax.random.normal(k_train, (N_TRAIN, C, H, W), jnp.float32)
    x = jax.random.normal(k_test, (B, C, H, W), jnp.float32)

    model = WrapModelPallas(w, b, train_imgs)
    distances = jax.block_until_ready(model.forward(x))
    assert distances.shape == (B,) and distances.dtype == jnp.float32

    # pure-JAX f32 reference (faiss IndexFlatL2, n_neighbours=2 == sum of 2 smallest L2^2)
    tr = train_imgs.reshape(N_TRAIN, F) @ w + b
    te = x.reshape(B, F) @ w + b
    d_ref = (jnp.sum(te * te, -1, keepdims=True)
             + jnp.sum(tr * tr, -1)[None, :]
             - 2.0 * te @ tr.T)
    ref = jnp.sum(jnp.sort(jnp.maximum(d_ref, 0.0), axis=-1)[:, :2], axis=-1)
    # bf16 MXU operands (projection + cross-term) => ~1e-2 relative tolerance
    np.testing.assert_allclose(np.asarray(distances), np.asarray(ref),
                               rtol=1e-2, atol=1e-1)

    print("KERNEL_OK")
</pallas_src>

<mosaic_0001>
module attributes {stable_mosaic.version = 11 : i64} {
  func.func @_linear_kernel(%arg0: i32, %arg1: i32, %arg2: memref<200x512xbf16, #tpu.memory_space<vmem>>, %arg3: memref<512x32xbf16, #tpu.memory_space<vmem>>, %arg4: memref<1x32xf32, #tpu.memory_space<vmem>>, %arg5: memref<200x32xf32, #tpu.memory_space<vmem>>, %arg6: memref<200x32xf32, #tpu.memory_space<vmem>>) attributes {dimension_semantics = [#tpu.dimension_semantics<parallel>, #tpu.dimension_semantics<arbitrary>], iteration_bounds = array<i64: 1, 2>, scalar_prefetch = 0 : i64, scratch_operands = 1 : i64, tpu.core_type = #tpu.core_type<tc>, window_params = [{transform_indices = @transform_0, window_bounds = array<i64: 200, 512>}, {transform_indices = @transform_1, window_bounds = array<i64: 512, 32>}, {pipeline_mode = #tpu.pipeline_mode<synchronous>, transform_indices = @transform_2, window_bounds = array<i64: 1, 32>}, {transform_indices = @transform_3, window_bounds = array<i64: 200, 32>}]} {
    %c0_i32 = arith.constant 0 : i32
    %0 = arith.cmpi eq, %arg1, %c0_i32 : i32
    %1 = arith.extui %0 : i1 to i32
    %c0_i32_0 = arith.constant 0 : i32
    %2 = arith.cmpi ne, %1, %c0_i32_0 : i32
    scf.if %2 {
      %cst_9 = arith.constant 0.000000e+00 : f32
      %12 = vector.broadcast %cst_9 : f32 to vector<200x32xf32>
      %c0_10 = arith.constant 0 : index
      %c0_11 = arith.constant 0 : index
      %13 = vector.load %arg6[%c0_10, %c0_11] : memref<200x32xf32, #tpu.memory_space<vmem>>, vector<200x32xf32>
      tpu.vector_store %arg6[%c0_10, %c0_11], %12 {strides = array<i32>} : memref<200x32xf32, #tpu.memory_space<vmem>>, vector<200x32xf32>,
    } else {
    }
    %c0 = arith.constant 0 : index
    %c0_1 = arith.constant 0 : index
    %3 = vector.load %arg6[%c0, %c0_1] : memref<200x32xf32, #tpu.memory_space<vmem>>, vector<200x32xf32>
    %c0_2 = arith.constant 0 : index
    %c0_3 = arith.constant 0 : index
    %4 = vector.load %arg2[%c0_2, %c0_3] : memref<200x512xbf16, #tpu.memory_space<vmem>>, vector<200x512xbf16>
    %c0_4 = arith.constant 0 : index
    %c0_5 = arith.constant 0 : index
    %5 = vector.load %arg3[%c0_4, %c0_5] : memref<512x32xbf16, #tpu.memory_space<vmem>>, vector<512x32xbf16>
    %cst = arith.constant dense<0.000000e+00> : vector<200x32xf32>
    %6 = tpu.matmul %4, %5, %cst {dimension_numbers = #tpu.dot_dimension_numbers<[1], [0], [0], [1], [0, 0, 1, 1], [], []>} : vector<200x512xbf16>, vector<512x32xbf16>, vector<200x32xf32> -> vector<200x32xf32>
    %7 = arith.addf %3, %6 : vector<200x32xf32>
    %c0_6 = arith.constant 0 : index
    %c0_7 = arith.constant 0 : index
    %8 = vector.load %arg6[%c0_6, %c0_7] : memref<200x32xf32, #tpu.memory_space<vmem>>, vector<200x32xf32>
    tpu.vector_store %arg6[%c0_6, %c0_7], %7 {strides = array<i32>} : memref<200x32xf32, #tpu.memory_space<vmem>>, vector<200x32xf32>,
    %c1_i32 = arith.constant 1 : i32
    %9 = arith.cmpi eq, %arg1, %c1_i32 : i32
    %10 = arith.extui %9 : i1 to i32
    %c0_i32_8 = arith.constant 0 : i32
    %11 = arith.cmpi ne, %10, %c0_i32_8 : i32
    scf.if %11 {
      %c0_9 = arith.constant 0 : index
      %c0_10 = arith.constant 0 : index
      %12 = vector.load %arg6[%c0_9, %c0_10] : memref<200x32xf32, #tpu.memory_space<vmem>>, vector<200x32xf32>
      %c0_11 = arith.constant 0 : index
      %c0_12 = arith.constant 0 : index
      %13 = vector.load %arg4[%c0_11, %c0_12] : memref<1x32xf32, #tpu.memory_space<vmem>>, vector<1x32xf32>
      %14 = vector.broadcast %13 : vector<1x32xf32> to vector<200x32xf32>
      %15 = arith.addf %12, %14 : vector<200x32xf32>
      %c0_13 = arith.constant 0 : index
      %c0_14 = arith.constant 0 : index
      %16 = vector.load %arg5[%c0_13, %c0_14] : memref<200x32xf32, #tpu.memory_space<vmem>>, vector<200x32xf32>
      tpu.vector_store %arg5[%c0_13, %c0_14], %15 {strides = array<i32>} : memref<200x32xf32, #tpu.memory_space<vmem>>, vector<200x32xf32>,
    } else {
    }
    return
  }
  func.func @transform_0(%arg0: i32, %arg1: i32) -> (i32, i32) {
    %c0_i32 = arith.constant 0 : i32
    return %arg0, %arg1 : i32, i32
  }
  func.func @transform_1(%arg0: i32, %arg1: i32) -> (i32, i32) {
    %c0_i32 = arith.constant 0 : i32
    %c0_i32_0 = arith.constant 0 : i32
    return %arg1, %c0_i32 : i32, i32
  }
  func.func @transform_2(%arg0: i32, %arg1: i32) -> (i32, i32) {
    %c0_i32 = arith.constant 0 : i32
    %c0_i32_0 = arith.constant 0 : i32
    %c0_i32_1 = arith.constant 0 : i32
    return %c0_i32, %c0_i32_0 : i32, i32
  }
  func.func @transform_3(%arg0: i32, %arg1: i32) -> (i32, i32) {
    %c0_i32 = arith.constant 0 : i32
    %c0_i32_0 = arith.constant 0 : i32
    return %arg0, %c0_i32 : i32, i32
  }
}

</mosaic_0001>

<llo_original>
// kernel: tpu_custom_call.1
$region0: #{tpu_custom_call.1}
  #allocation0 [shape = 'u32[]', space=smem, size = 0x4, offset = 0x4, fixed_abs, tag = 'smem constant byte address 0x4 - core index']
  #allocation1 [shape = 'u32[144,128]{1,0:T(1,128)}', space=vmem, size = 0x12000, scoped, tag = 'internal scratch']
  #allocation2 [shape = 'f32[200,32]{1,0:T(8,128)}', space=vmem, size = 0x19000, scoped, tag = 'scratch operand']
  %s0 = inlined_call_operand.hbm [shape: bf16[200,1024], index: 0, kind: input, shape index: {}]
  %s1 = inlined_call_operand.vmem [shape: bf16[1024,32], index: 1, kind: input, shape index: {}]
  %s2 = inlined_call_operand.vmem [shape: f32[1,32], index: 2, kind: input, shape index: {}]
  %s3 = inlined_call_operand.vmem [shape: f32[200,32], index: 3, kind: output, shape index: {}]
  %s4 = sld [smem:[#allocation0]]
  $region57: #{tpu_custom_call.1} parent=0
    _
  %s6 = ssub.s32 1, %s4
  %s7 = scalar_select 0, %s6, %s4
  $region1: #{tpu_custom_call.1} parent=0
    #allocation3 [shape = 'u8[409600]{0}', space=vmem, size = 0x64000, scoped, tag = 'input window, operand 0']
    #allocation4 [shape = 's32[2]{0}', space=sflag, size = 0x8, scoped, tag = 'scoped memory for tpu_custom_call.1']
    %8 = vsyncpa [#allocation4], 0
    %s9 = scalar_lea.sflag [#allocation4], 1
    %10 = vsyncpa %s9, 0
    loop: start=0, step=1, limit=4
    $region2: #{tpu_custom_call.1} parent=1 // loop_pre_header
      _
    $region3: #{tpu_custom_call.1} parent=1 // loop_header
      %s12 = sphi 0, %s16
      %p13 = scmp.ge.s32.totalorder %s12, 4
      %s19 = sphi 0, %s31
      %s20 = sphi 0, %s27
      %s21 = sphi 0, %s19
      %s22 = sphi 0, %s20
      %s23 = sphi 0, %s21
      %s24 = sphi 0, %s22
      %s36 = sphi 0, %s38
      %s39 = sphi 0, %s36
      %s40 = sphi 0, %s39
      %s56 = sphi 0, %s40
      %s62 = sphi 0, %s64
      %s65 = sphi 0, %s62
      %s66 = sphi 0, %s65
      %s82 = sphi 0, %s66
      %s86 = sphi 0, %s86
      %s88 = sphi 0, %s86
      %s89 = sphi 0, %s88
      %s103 = sphi 0, %s89
      %s109 = sphi 0, %s111
      %s112 = sphi 0, %s109
      %s113 = sphi 0, %s112
      %s129 = sphi 0, %s113
    $region4: #{tpu_custom_call.1} parent=1 // loop_header_branch
      %15 = sbr.rel (%p13) target = $region8
    $region5: #{tpu_custom_call.1} parent=1 // loop_body
      %s17 = ssub.s32 %s12, 1
      %s18 = ssub.s32 %s12, 2
      %s25 = sadd.s32 1, %s20
      %p26 = scmp.ge.s32.totalorder %s25, 2
      %s27 = scalar_select %p26, 0, %s25
      %s28 = sadd.s32 1, %s19
      %s29 = scalar_select %p26, %s28, %s19
      %p30 = scmp.ge.s32.totalorder %s29, 1
      %s31 = scalar_select %p30, 0, %s29
      %s32 = ssub.s32 %s19, %s31
      %s33 = ssub.s32 %s20, %s27
      %s34 = sor.u32 %s32, %s33
      %p35 = scmp.eq.s32.totalorder %s34, 0
      %s37 = sadd.s32 %s36, 1
      %s38 = scalar_select %p35, %s36, %s37
      %p41 = pneg %p35
      %p42 = scmp.eq.s32.totalorder %s12, 1
      %p43 = por %p41, %p42
      %p44 = scmp.ne.s32.totalorder %s36, %s39
      %p45 = scmp.eq.s32.totalorder %s12, 0
      %p46 = por %p44, %p45
      %p47 = scmp.ne.s32.totalorder %s36, %s39
      %p48 = scmp.eq.s32.totalorder %s17, 1
      %p49 = por %p47, %p48
      %p50 = scmp.ne.s32.totalorder %s39, %s40
      %p51 = scmp.eq.s32.totalorder %s17, 0
      %p52 = por %p50, %p51
      %p53 = scmp.ne.s32.totalorder %s39, %s40
      %p54 = scmp.eq.s32.totalorder %s18, 1
      %p55 = por %p53, %p54
      %p57 = scmp.ne.s32.totalorder %s40, %s56
      %p58 = scmp.eq.s32.totalorder %s18, 0
      %p59 = por %p57, %p58
      %s60 = ssub.s32 %s20, %s27
      %p61 = scmp.eq.s32.totalorder %s60, 0
      %s63 = sadd.s32 %s62, 1
      %s64 = scalar_select %p61, %s62, %s63
      %p67 = pneg %p61
      %p68 = scmp.eq.s32.totalorder %s12, 1
      %p69 = por %p67, %p68
      %p70 = scmp.ne.s32.totalorder %s62, %s65
      %p71 = scmp.eq.s32.totalorder %s12, 0
      %p72 = por %p70, %p71
      %p73 = scmp.ne.s32.totalorder %s62, %s65
      %p74 = scmp.eq.s32.totalorder %s17, 1
      %p75 = por %p73, %p74
      %p76 = scmp.ne.s32.totalorder %s65, %s66
      %p77 = scmp.eq.s32.totalorder %s17, 0
      %p78 = por %p76, %p77
      %p79 = scmp.ne.s32.totalorder %s65, %s66
      %p80 = scmp.eq.s32.totalorder %s18, 1
      %p81 = por %p79, %p80
      %p83 = scmp.ne.s32.totalorder %s66, %s82
      %p84 = scmp.eq.s32.totalorder %s18, 0
      %p85 = por %p83, %p84
      %s87 = sadd.s32 %s86, 1
      %p90 = scmp.eq.s32.totalorder %s12, 1
      %p91 = scmp.ne.s32.totalorder %s86, %s88
      %p92 = scmp.eq.s32.totalorder %s12, 0
      %p93 = por %p91, %p92
      %p94 = scmp.ne.s32.totalorder %s86, %s88
      %p95 = scmp.eq.s32.totalorder %s17, 1
      %p96 = por %p94, %p95
      %p97 = scmp.ne.s32.totalorder %s88, %s89
      %p98 = scmp.eq.s32.totalorder %s17, 0
      %p99 = por %p97, %p98
      %p100 = scmp.ne.s32.totalorder %s88, %s89
      %p101 = scmp.eq.s32.totalorder %s18, 1
      %p102 = por %p100, %p101
      %p104 = scmp.ne.s32.totalorder %s89, %s103
      %p105 = scmp.eq.s32.totalorder %s18, 0
      %p106 = por %p104, %p105
      %s107 = ssub.s32 %s19, %s31
      %p108 = scmp.eq.s32.totalorder %s107, 0
      %s110 = sadd.s32 %s109, 1
      %s111 = scalar_select %p108, %s109, %s110
      %p114 = pneg %p108
      %p115 = scmp.eq.s32.totalorder %s12, 1
      %p116 = por %p114, %p115
      %p117 = scmp.ne.s32.totalorder %s109, %s112
      %p118 = scmp.eq.s32.totalorder %s12, 0
      %p119 = por %p117, %p118
      %p120 = scmp.ne.s32.totalorder %s109, %s112
      %p121 = scmp.eq.s32.totalorder %s17, 1
      %p122 = por %p120, %p121
      %p123 = scmp.ne.s32.totalorder %s112, %s113
      %p124 = scmp.eq.s32.totalorder %s17, 0
      %p125 = por %p123, %p124
      %p126 = scmp.ne.s32.totalorder %s112, %s113
      %p127 = scmp.eq.s32.totalorder %s18, 1
      %p128 = por %p126, %p127
      %p130 = scmp.ne.s32.totalorder %s113, %s129
      %p131 = scmp.eq.s32.totalorder %s18, 0
      %p132 = por %p130, %p131
      %p133 = scmp.le.s32.totalorder 1, %s12
      %p134 = scmp.lt.s32.totalorder %s12, 3
      %p135 = pnand %p133, %p134
      %p136 = pneg %p135
      // Predicated region
      $region9: #{tpu_custom_call.1} parent=5 // pred_check
        _
      $region10: #{tpu_custom_call.1} parent=5 // pred_check_branch
        %138 = sbr.rel (%p135) target = $region12
      $region11: #{tpu_custom_call.1} parent=5 // pred_region
        %s139 = ssub.s32 %s12, 1
        // Predicated region
        $region13: #{tpu_custom_call.1} parent=11 // pred_check
          %p140 = pneg %p99
        $region14: #{tpu_custom_call.1} parent=11 // pred_check_branch
          %142 = sbr.rel (%p140) target = $region16
        $region15: #{tpu_custom_call.1} parent=11 // pred_region
          _
        $region16: #{tpu_custom_call.1} parent=11 // pred_fallthru
          _
      $region12: #{tpu_custom_call.1} parent=5 // pred_fallthru
        _
      %p143 = scmp.lt.s32.totalorder %s12, 2
      // Predicated region
      $region17: #{tpu_custom_call.1} parent=5 // pred_check
        %p144 = pneg %p143
      $region18: #{tpu_custom_call.1} parent=5 // pred_check_branch
        %146 = sbr.rel (%p144) target = $region20
      $region19: #{tpu_custom_call.1} parent=5 // pred_region
        // Predicated region
        $region21: #{tpu_custom_call.1} parent=19 // pred_check
          %p147 = pneg %p46
        $region22: #{tpu_custom_call.1} parent=19 // pred_check_branch
          %149 = sbr.rel (%p147) target = $region24
        $region23: #{tpu_custom_call.1} parent=19 // pred_region
          %s150 = sand.u32 %s36, 1
          %s151 = scalar_lea.sflag [#allocation4], %s150
          %s152 = sand.u32 %s36, 1
          %s153 = smul.addr %s152, 400
          %s154 = scalar_lea.vmem [#allocation3], %s153
          %s155 = smul.u32 25, %s19
          %s156 = smul.u32 4, %s20
          %s158 = ssub.s32 6400, 6400
          %159 = vsyncadd %s151, %s158
          %s160 = smul.addr %s155, 8
          %s161 = sadd.s32 %s156, %s160
          %s162 = smul.addr %s161, 64
          %s163 = scalar_lea.hbm %s0, %s162
          %s164 = sshll.u32 %s154, 4
          %s165 = int_to_ptr.vmem [resolvable:$true] %s164
          %170 = dma.hbm_to_vmem [thread:$0]  %s163, 6400, %s165, %s151, 512, 256, 16
        $region24: #{tpu_custom_call.1} parent=19 // pred_fallthru
          _
        // Predicated region
        $region25: #{tpu_custom_call.1} parent=19 // pred_check
          %p171 = pneg %p72
        $region26: #{tpu_custom_call.1} parent=19 // pred_check_branch
          %173 = sbr.rel (%p171) target = $region28
        $region27: #{tpu_custom_call.1} parent=19 // pred_region
          %s174 = smul.u32 64, %s20
          %p175 = scmp.lt.s32.totalorder %s174, 127
          %s176 = scalar_select %p175, %s174, 127
          %s177 = smul.addr %s176, 4
          %s178 = scalar_lea.vmem %s1, %s177
          %s179 = smul.u32 64, %s20
        $region28: #{tpu_custom_call.1} parent=19 // pred_fallthru
          _
      $region20: #{tpu_custom_call.1} parent=5 // pred_fallthru
        _
      %p180 = scmp.le.s32.totalorder 1, %s12
      %p181 = scmp.lt.s32.totalorder %s12, 3
      %p182 = pnand %p180, %p181
      %p183 = pneg %p182
      // Predicated region
      $region29: #{tpu_custom_call.1} parent=5 // pred_check
        _
      $region30: #{tpu_custom_call.1} parent=5 // pred_check_branch
        %185 = sbr.rel (%p182) target = $region32
      $region31: #{tpu_custom_call.1} parent=5 // pred_region
        %s186 = ssub.s32 %s12, 1
        %s187 = sand.u32 %s39, 1
        %s188 = scalar_lea.sflag [#allocation4], %s187
        %s189 = sand.u32 %s39, 1
        %s190 = smul.addr %s189, 400
        %s191 = scalar_lea.vmem [#allocation3], %s190
        // Predicated region
        $region33: #{tpu_custom_call.1} parent=31 // pred_check
          %p192 = pneg %p52
        $region34: #{tpu_custom_call.1} parent=31 // pred_check_branch
          %194 = sbr.rel (%p192) target = $region36
        $region35: #{tpu_custom_call.1} parent=31 // pred_region
          %195 = dma.done %s188, 6400
        $region36: #{tpu_custom_call.1} parent=31 // pred_fallthru
          _
        %s196 = sand.u32 %s39, 1
        %s197 = scalar_lea.sflag [#allocation4], %s196
        %s198 = sand.u32 %s39, 1
        %s199 = smul.addr %s198, 400
        %s200 = scalar_lea.vmem [#allocation3], %s199
        %p201 = pneg %p52
        %p202 = pneg %p49
        %s203 = smul.u32 64, %s22
        %p204 = scmp.lt.s32.totalorder %s203, 127
        %s205 = scalar_select %p204, %s203, 127
        %s206 = smul.addr %s205, 4
        %s207 = scalar_lea.vmem %s1, %s206
        %p208 = pneg %p78
        %p209 = pneg %p75
        %p210 = pneg %p99
        %p211 = pneg %p96
        %p212 = pneg %p125
        %p213 = pneg %p122
        %s214 = smul.u32 25, %s21
        %p215 = scmp.lt.s32.totalorder %s214, 24
        %s216 = scalar_select %p215, %s214, 24
        %s217 = smul.addr %s216, 8
        %s218 = scalar_lea.vmem %s3, %s217
        %s219 = smul.u32 25, %s21
        %s220 = smul.u32 4, %s22
        %s221 = smul.u32 64, %s22
        %p222 = scmp.lt.s32.totalorder %s221, 127
        %s223 = scalar_select %p222, %s221, 127
        %s224 = smul.addr %s223, 4
        %s225 = scalar_lea.vmem %s1, %s224
        %s226 = smul.u32 64, %s22
        %s227 = smul.u32 25, %s21
        %p228 = scmp.lt.s32.totalorder %s227, 24
        %s229 = scalar_select %p228, %s227, 24
        %s230 = smul.addr %s229, 8
        %s231 = scalar_lea.vmem %s3, %s230
        %s232 = smul.u32 25, %s21
        %p234 = scmp.eq.s32.totalorder %s22, 0
        // Predicated region
        $region37: #{tpu_custom_call.1} parent=31 // pred_check
          %p235 = pneg %p234
        $region38: #{tpu_custom_call.1} parent=31 // pred_check_branch
          %237 = sbr.rel (%p235) target = $region40
        $region39: #{tpu_custom_call.1} parent=31 // pred_region
          %vm238 = vcmask 261120
          %239 = vst.msk [vmem:[#allocation2] sm:$0xff] %vm238, 0.0
          %240 = vst.msk [vmem:[#allocation2 + $0x8] sm:$0xff] %vm238, 0.0
          %241 = vst.msk [vmem:[#allocation2 + $0x10] sm:$0xff] %vm238, 0.0
          %242 = vst.msk [vmem:[#allocation2 + $0x18] sm:$0xff] %vm238, 0.0
          %243 = vst.msk [vmem:[#allocation2 + $0x20] sm:$0xff] %vm238, 0.0
          %244 = vst.msk [vmem:[#allocation2 + $0x28] sm:$0xff] %vm238, 0.0
          %245 = vst.msk [vmem:[#allocation2 + $0x30] sm:$0xff] %vm238, 0.0
          %246 = vst.msk [vmem:[#allocation2 + $0x38] sm:$0xff] %vm238, 0.0
          %247 = vst.msk [vmem:[#allocation2 + $0x40] sm:$0xff] %vm238, 0.0
          %248 = vst.msk [vmem:[#allocation2 + $0x48] sm:$0xff] %vm238, 0.0
          %249 = vst.msk [vmem:[#allocation2 + $0x50] sm:$0xff] %vm238, 0.0
          %250 = vst.msk [vmem:[#allocation2 + $0x58] sm:$0xff] %vm238, 0.0
          %251 = vst.msk [vmem:[#allocation2 + $0x60] sm:$0xff] %vm238, 0.0
          %252 = vst.msk [vmem:[#allocation2 + $0x68] sm:$0xff] %vm238, 0.0
          %253 = vst.msk [vmem:[#allocation2 + $0x70] sm:$0xff] %vm238, 0.0
          %254 = vst.msk [vmem:[#allocation2 + $0x78] sm:$0xff] %vm238, 0.0
          %255 = vst.msk [vmem:[#allocation2 + $0x80] sm:$0xff] %vm238, 0.0
          %256 = vst.msk [vmem:[#allocation2 + $0x88] sm:$0xff] %vm238, 0.0
          %257 = vst.msk [vmem:[#allocation2 + $0x90] sm:$0xff] %vm238, 0.0
          %258 = vst.msk [vmem:[#allocation2 + $0x98] sm:$0xff] %vm238, 0.0
          %259 = vst.msk [vmem:[#allocation2 + $0xa0] sm:$0xff] %vm238, 0.0
          %260 = vst.msk [vmem:[#allocation2 + $0xa8] sm:$0xff] %vm238, 0.0
          %261 = vst.msk [vmem:[#allocation2 + $0xb0] sm:$0xff] %vm238, 0.0
          %262 = vst.msk [vmem:[#allocation2 + $0xb8] sm:$0xff] %vm238, 0.0
          %263 = vst.msk [vmem:[#allocation2 + $0xc0] sm:$0xff] %vm238, 0.0
        $region40: #{tpu_custom_call.1} parent=31 // pred_fallthru
          _
        %v264 = vld [vmem:[#allocation2] sm:$0xff]
        %v265 = vld [vmem:[#allocation2 + $0x8] sm:$0xff]
        %v266 = vld [vmem:[#allocation2 + $0x10] sm:$0xff]
        %v267 = vld [vmem:[#allocation2 + $0x18] sm:$0xff]
        %v268 = vld [vmem:[#allocation2 + $0x20] sm:$0xff]
        %v269 = vld [vmem:[#allocation2 + $0x28] sm:$0xff]
        %v270 = vld [vmem:[#allocation2 + $0x30] sm:$0xff]
        %v271 = vld [vmem:[#allocation2 + $0x38] sm:$0xff]
        %v272 = vld [vmem:[#allocation2 + $0x40] sm:$0xff]
        %v273 = vld [vmem:[#allocation2 + $0x48] sm:$0xff]
        %v274 = vld [vmem:[#allocation2 + $0x50] sm:$0xff]
        %v275 = vld [vmem:[#allocation2 + $0x58] sm:$0xff]
        %v276 = vld [vmem:[#allocation2 + $0x60] sm:$0xff]
        %v277 = vld [vmem:[#allocation2 + $0x68] sm:$0xff]
        %v278 = vld [vmem:[#allocation2 + $0x70] sm:$0xff]
        %v279 = vld [vmem:[#allocation2 + $0x78] sm:$0xff]
        %v280 = vld [vmem:[#allocation2 + $0x80] sm:$0xff]
        %v281 = vld [vmem:[#allocation2 + $0x88] sm:$0xff]
        %v282 = vld [vmem:[#allocation2 + $0x90] sm:$0xff]
        %v283 = vld [vmem:[#allocation2 + $0x98] sm:$0xff]
        %v284 = vld [vmem:[#allocation2 + $0xa0] sm:$0xff]
        %v285 = vld [vmem:[#allocation2 + $0xa8] sm:$0xff]
        %v286 = vld [vmem:[#allocation2 + $0xb0] sm:$0xff]
        %v287 = vld [vmem:[#allocation2 + $0xb8] sm:$0xff]
        %v288 = vld [vmem:[#allocation2 + $0xc0] sm:$0xff]
        %v289 = vld [vmem:[%s191] sm:$0xff]
        %v290 = vld [vmem:[%s191 + $0x8] sm:$0xff]
        %v291 = vld [vmem:[%s191 + $0x10] sm:$0xff]
        %v292 = vld [vmem:[%s191 + $0x18] sm:$0xff]
        %v293 = vld [vmem:[%s191 + $0x20] sm:$0xff]
        %v294 = vld [vmem:[%s191 + $0x28] sm:$0xff]
        %v295 = vld [vmem:[%s191 + $0x30] sm:$0xff]
        %v296 = vld [vmem:[%s191 + $0x38] sm:$0xff]
        %v297 = vld [vmem:[%s191 + $0x40] sm:$0xff]
        %v298 = vld [vmem:[%s191 + $0x48] sm:$0xff]
        %v299 = vld [vmem:[%s191 + $0x50] sm:$0xff]
        %v300 = vld [vmem:[%s191 + $0x58] sm:$0xff]
        %v301 = vld [vmem:[%s191 + $0x60] sm:$0xff]
        %v302 = vld [vmem:[%s191 + $0x68] sm:$0xff]
        %v303 = vld [vmem:[%s191 + $0x70] sm:$0xff]
        %v304 = vld [vmem:[%s191 + $0x78] sm:$0xff]
        %v305 = vld [vmem:[%s191 + $0x80] sm:$0xff]
        %v306 = vld [vmem:[%s191 + $0x88] sm:$0xff]
        %v307 = vld [vmem:[%s191 + $0x90] sm:$0xff]
        %v308 = vld [vmem:[%s191 + $0x98] sm:$0xff]
        %v309 = vld [vmem:[%s191 + $0xa0] sm:$0xff]
        %v310 = vld [vmem:[%s191 + $0xa8] sm:$0xff]
        %v311 = vld [vmem:[%s191 + $0xb0] sm:$0xff]
        %v312 = vld [vmem:[%s191 + $0xb8] sm:$0xff]
        %v313 = vld [vmem:[%s191 + $0xc0] sm:$0xff]
        %v314 = vld [vmem:[%s191 + $0xc8] sm:$0xff]
        %v315 = vld [vmem:[%s191 + $0xd0] sm:$0xff]
        %v316 = vld [vmem:[%s191 + $0xd8] sm:$0xff]
        %v317 = vld [vmem:[%s191 + $0xe0] sm:$0xff]
        %v318 = vld [vmem:[%s191 + $0xe8] sm:$0xff]
        %v319 = vld [vmem:[%s191 + $0xf0] sm:$0xff]
        %v320 = vld [vmem:[%s191 + $0xf8] sm:$0xff]
        %v321 = vld [vmem:[%s191 + $0x100] sm:$0xff]
        %v322 = vld [vmem:[%s191 + $0x108] sm:$0xff]
        %v323 = vld [vmem:[%s191 + $0x110] sm:$0xff]
        %v324 = vld [vmem:[%s191 + $0x118] sm:$0xff]
        %v325 = vld [vmem:[%s191 + $0x120] sm:$0xff]
        %v326 = vld [vmem:[%s191 + $0x128] sm:$0xff]
        %v327 = vld [vmem:[%s191 + $0x130] sm:$0xff]
        %v328 = vld [vmem:[%s191 + $0x138] sm:$0xff]
        %v329 = vld [vmem:[%s191 + $0x140] sm:$0xff]
        %v330 = vld [vmem:[%s191 + $0x148] sm:$0xff]
        %v331 = vld [vmem:[%s191 + $0x150] sm:$0xff]
        %v332 = vld [vmem:[%s191 + $0x158] sm:$0xff]
        %v333 = vld [vmem:[%s191 + $0x160] sm:$0xff]
        %v334 = vld [vmem:[%s191 + $0x168] sm:$0xff]
        %v335 = vld [vmem:[%s191 + $0x170] sm:$0xff]
        %v336 = vld [vmem:[%s191 + $0x178] sm:$0xff]
        %v337 = vld [vmem:[%s191 + $0x180] sm:$0xff]
        %v338 = vld [vmem:[%s191 + $0x188] sm:$0xff]
        %v339 = vld [vmem:[%s225] sm:$0xf]
        %v340 = vld [vmem:[%s225 + $0x4] sm:$0xf]
        %v341 = vld [vmem:[%s225 + $0x8] sm:$0xf]
        %v342 = vld [vmem:[%s225 + $0xc] sm:$0xf]
        %v343 = vld [vmem:[%s225 + $0x10] sm:$0xf]
        %v344 = vld [vmem:[%s225 + $0x14] sm:$0xf]
        %v345 = vld [vmem:[%s225 + $0x18] sm:$0xf]
        %v346 = vld [vmem:[%s225 + $0x1c] sm:$0xf]
        %v347 = vld [vmem:[%s225 + $0x20] sm:$0xf]
        %v348 = vld [vmem:[%s225 + $0x24] sm:$0xf]
        %v349 = vld [vmem:[%s225 + $0x28] sm:$0xf]
        %v350 = vld [vmem:[%s225 + $0x2c] sm:$0xf]
        %v351 = vld [vmem:[%s225 + $0x30] sm:$0xf]
        %v352 = vld [vmem:[%s225 + $0x34] sm:$0xf]
        %v353 = vld [vmem:[%s225 + $0x38] sm:$0xf]
        %v354 = vld [vmem:[%s225 + $0x3c] sm:$0xf]
        %v355 = vld [vmem:[%s225 + $0x40] sm:$0xf]
        %v356 = vld [vmem:[%s225 + $0x44] sm:$0xf]
        %v357 = vld [vmem:[%s225 + $0x48] sm:$0xf]
        %v358 = vld [vmem:[%s225 + $0x4c] sm:$0xf]
        %v359 = vld [vmem:[%s225 + $0x50] sm:$0xf]
        %v360 = vld [vmem:[%s225 + $0x54] sm:$0xf]
        %v361 = vld [vmem:[%s225 + $0x58] sm:$0xf]
        %v362 = vld [vmem:[%s225 + $0x5c] sm:$0xf]
        %v363 = vld [vmem:[%s225 + $0x60] sm:$0xf]
        %v364 = vld [vmem:[%s225 + $0x64] sm:$0xf]
        %v365 = vld [vmem:[%s225 + $0x68] sm:$0xf]
        %v366 = vld [vmem:[%s225 + $0x6c] sm:$0xf]
        %v367 = vld [vmem:[%s225 + $0x70] sm:$0xf]
        %v368 = vld [vmem:[%s225 + $0x74] sm:$0xf]
        %v369 = vld [vmem:[%s225 + $0x78] sm:$0xf]
        %v370 = vld [vmem:[%s225 + $0x7c] sm:$0xf]
        %v371 = vld [vmem:[%s225 + $0x80] sm:$0xf]
        %v372 = vld [vmem:[%s225 + $0x84] sm:$0xf]
        %v373 = vld [vmem:[%s225 + $0x88] sm:$0xf]
        %v374 = vld [vmem:[%s225 + $0x8c] sm:$0xf]
        %v375 = vld [vmem:[%s225 + $0x90] sm:$0xf]
        %v376 = vld [vmem:[%s225 + $0x94] sm:$0xf]
        %v377 = vld [vmem:[%s225 + $0x98] sm:$0xf]
        %v378 = vld [vmem:[%s225 + $0x9c] sm:$0xf]
        %v379 = vld [vmem:[%s225 + $0xa0] sm:$0xf]
        %v380 = vld [vmem:[%s225 + $0xa4] sm:$0xf]
        %v381 = vld [vmem:[%s225 + $0xa8] sm:$0xf]
        %v382 = vld [vmem:[%s225 + $0xac] sm:$0xf]
        %v383 = vld [vmem:[%s225 + $0xb0] sm:$0xf]
        %v384 = vld [vmem:[%s225 + $0xb4] sm:$0xf]
        %v385 = vld [vmem:[%s225 + $0xb8] sm:$0xf]
        %v386 = vld [vmem:[%s225 + $0xbc] sm:$0xf]
        %v387 = vld [vmem:[%s225 + $0xc0] sm:$0xf]
        %v388 = vld [vmem:[%s225 + $0xc4] sm:$0xf]
        %v389 = vld [vmem:[%s225 + $0xc8] sm:$0xf]
        %v390 = vld [vmem:[%s225 + $0xcc] sm:$0xf]
        %v391 = vld [vmem:[%s225 + $0xd0] sm:$0xf]
        %v392 = vld [vmem:[%s225 + $0xd4] sm:$0xf]
        %v393 = vld [vmem:[%s225 + $0xd8] sm:$0xf]
        %v394 = vld [vmem:[%s225 + $0xdc] sm:$0xf]
        %v395 = vld [vmem:[%s225 + $0xe0] sm:$0xf]
        %v396 = vld [vmem:[%s225 + $0xe4] sm:$0xf]
        %v397 = vld [vmem:[%s225 + $0xe8] sm:$0xf]
        %v398 = vld [vmem:[%s225 + $0xec] sm:$0xf]
        %v399 = vld [vmem:[%s225 + $0xf0] sm:$0xf]
        %v400 = vld [vmem:[%s225 + $0xf4] sm:$0xf]
        %v401 = vld [vmem:[%s225 + $0xf8] sm:$0xf]
        %v402 = vld [vmem:[%s225 + $0xfc] sm:$0xf]
        %v453 = vunpack.c.l.b16 %v289
        %v454 = vunpack.c.h.b16 %v289
        %v455 = vunpack.c.l.b16 %v290
        %v456 = vunpack.c.h.b16 %v290
        %v457 = vunpack.c.l.b16 %v291
        %v458 = vunpack.c.h.b16 %v291
        %v459 = vunpack.c.l.b16 %v292
        %v460 = vunpack.c.h.b16 %v292
        %v461 = vunpack.c.l.b16 %v293
        %v462 = vunpack.c.h.b16 %v293
        %v463 = vunpack.c.l.b16 %v294
        %v464 = vunpack.c.h.b16 %v294
        %v465 = vunpack.c.l.b16 %v295
        %v466 = vunpack.c.h.b16 %v295
        %v467 = vunpack.c.l.b16 %v296
        %v468 = vunpack.c.h.b16 %v296
        %v469 = vunpack.c.l.b16 %v297
        %v470 = vunpack.c.h.b16 %v297
        %v471 = vunpack.c.l.b16 %v298
        %v472 = vunpack.c.h.b16 %v298
        %v473 = vunpack.c.l.b16 %v299
        %v474 = vunpack.c.h.b16 %v299
        %v475 = vunpack.c.l.b16 %v300
        %v476 = vunpack.c.h.b16 %v300
        %v477 = vunpack.c.l.b16 %v301
        %v478 = vunpack.c.h.b16 %v301
        %v479 = vunpack.c.l.b16 %v302
        %v480 = vunpack.c.h.b16 %v302
        %v481 = vunpack.c.l.b16 %v303
        %v482 = vunpack.c.h.b16 %v303
        %v483 = vunpack.c.l.b16 %v304
        %v484 = vunpack.c.h.b16 %v304
        %v485 = vunpack.c.l.b16 %v305
        %v486 = vunpack.c.h.b16 %v305
        %v487 = vunpack.c.l.b16 %v306
        %v488 = vunpack.c.h.b16 %v306
        %v489 = vunpack.c.l.b16 %v307
        %v490 = vunpack.c.h.b16 %v307
        %v491 = vunpack.c.l.b16 %v308
        %v492 = vunpack.c.h.b16 %v308
        %v493 = vunpack.c.l.b16 %v309
        %v494 = vunpack.c.h.b16 %v309
        %v495 = vunpack.c.l.b16 %v310
        %v496 = vunpack.c.h.b16 %v310
        %v497 = vunpack.c.l.b16 %v311
        %v498 = vunpack.c.h.b16 %v311
        %v499 = vunpack.c.l.b16 %v312
        %v500 = vunpack.c.h.b16 %v312
        %v501 = vunpack.c.l.b16 %v313
        %v502 = vunpack.c.h.b16 %v313
        %v503 = vunpack.c.l.b16 %v314
        %v504 = vunpack.c.h.b16 %v314
        %v505 = vunpack.c.l.b16 %v315
        %v506 = vunpack.c.h.b16 %v315
        %v507 = vunpack.c.l.b16 %v316
        %v508 = vunpack.c.h.b16 %v316
        %v509 = vunpack.c.l.b16 %v317
        %v510 = vunpack.c.h.b16 %v317
        %v511 = vunpack.c.l.b16 %v318
        %v512 = vunpack.c.h.b16 %v318
        %v513 = vunpack.c.l.b16 %v319
        %v514 = vunpack.c.h.b16 %v319
        %v515 = vunpack.c.l.b16 %v320
        %v516 = vunpack.c.h.b16 %v320
        %v517 = vunpack.c.l.b16 %v321
        %v518 = vunpack.c.h.b16 %v321
        %v519 = vunpack.c.l.b16 %v322
        %v520 = vunpack.c.h.b16 %v322
        %v521 = vunpack.c.l.b16 %v323
        %v522 = vunpack.c.h.b16 %v323
        %v523 = vunpack.c.l.b16 %v324
        %v524 = vunpack.c.h.b16 %v324
        %v525 = vunpack.c.l.b16 %v325
        %v526 = vunpack.c.h.b16 %v325
        %v527 = vunpack.c.l.b16 %v326
        %v528 = vunpack.c.h.b16 %v326
        %v529 = vunpack.c.l.b16 %v327
        %v530 = vunpack.c.h.b16 %v327
        %v531 = vunpack.c.l.b16 %v328
        %v532 = vunpack.c.h.b16 %v328
        %v533 = vunpack.c.l.b16 %v329
        %v534 = vunpack.c.h.b16 %v329
        %v535 = vunpack.c.l.b16 %v330
        %v536 = vunpack.c.h.b16 %v330
        %v537 = vunpack.c.l.b16 %v331
        %v538 = vunpack.c.h.b16 %v331
        %v539 = vunpack.c.l.b16 %v332
        %v540 = vunpack.c.h.b16 %v332
        %v541 = vunpack.c.l.b16 %v333
        %v542 = vunpack.c.h.b16 %v333
        %v543 = vunpack.c.l.b16 %v334
        %v544 = vunpack.c.h.b16 %v334
        %v545 = vunpack.c.l.b16 %v335
        %v546 = vunpack.c.h.b16 %v335
        %v547 = vunpack.c.l.b16 %v336
        %v548 = vunpack.c.h.b16 %v336
        %v549 = vunpack.c.l.b16 %v337
        %v550 = vunpack.c.h.b16 %v337
        %v551 = vunpack.c.l.b16 %v338
        %v552 = vunpack.c.h.b16 %v338
        %v553 = vpack.c.b16 %v457, %v453
        %v554 = vpack.c.b16 %v458, %v454
        %v555 = vpack.c.b16 %v459, %v455
        %v556 = vpack.c.b16 %v460, %v456
        %v557 = vpack.c.b16 %v465, %v461
        %v558 = vpack.c.b16 %v466, %v462
        %v559 = vpack.c.b16 %v467, %v463
        %v560 = vpack.c.b16 %v468, %v464
        %v561 = vpack.c.b16 %v473, %v469
        %v562 = vpack.c.b16 %v474, %v470
        %v563 = vpack.c.b16 %v475, %v471
        %v564 = vpack.c.b16 %v476, %v472
        %v565 = vpack.c.b16 %v481, %v477
        %v566 = vpack.c.b16 %v482, %v478
        %v567 = vpack.c.b16 %v483, %v479
        %v568 = vpack.c.b16 %v484, %v480
        %v569 = vpack.c.b16 %v489, %v485
        %v570 = vpack.c.b16 %v490, %v486
        %v571 = vpack.c.b16 %v491, %v487
        %v572 = vpack.c.b16 %v492, %v488
        %v573 = vpack.c.b16 %v497, %v493
        %v574 = vpack.c.b16 %v498, %v494
        %v575 = vpack.c.b16 %v499, %v495
        %v576 = vpack.c.b16 %v500, %v496
        %v577 = vpack.c.b16 %v505, %v501
        %v578 = vpack.c.b16 %v506, %v502
        %v579 = vpack.c.b16 %v507, %v503
        %v580 = vpack.c.b16 %v508, %v504
        %v581 = vpack.c.b16 %v513, %v509
        %v582 = vpack.c.b16 %v514, %v510
        %v583 = vpack.c.b16 %v515, %v511
        %v584 = vpack.c.b16 %v516, %v512
        %v585 = vpack.c.b16 %v521, %v517
        %v586 = vpack.c.b16 %v522, %v518
        %v587 = vpack.c.b16 %v523, %v519
        %v588 = vpack.c.b16 %v524, %v520
        %v589 = vpack.c.b16 %v529, %v525
        %v590 = vpack.c.b16 %v530, %v526
        %v591 = vpack.c.b16 %v531, %v527
        %v592 = vpack.c.b16 %v532, %v528
        %v593 = vpack.c.b16 %v537, %v533
        %v594 = vpack.c.b16 %v538, %v534
        %v595 = vpack.c.b16 %v539, %v535
        %v596 = vpack.c.b16 %v540, %v536
        %v597 = vpack.c.b16 %v545, %v541
        %v598 = vpack.c.b16 %v546, %v542
        %v599 = vpack.c.b16 %v547, %v543
        %v600 = vpack.c.b16 %v548, %v544
        %v601 = vpack.c.b16 %v549, %v549
        %v602 = vpack.c.b16 %v550, %v550
        %v603 = vpack.c.b16 %v551, %v551
        %v604 = vpack.c.b16 %v552, %v552
        %v721 = vunpack.c.l.b16 %v339
        %v722 = vunpack.c.l.b16 %v340
        %v723 = vunpack.c.l.b16 %v341
        %v724 = vunpack.c.l.b16 %v342
        %v725 = vunpack.c.l.b16 %v343
        %v726 = vunpack.c.l.b16 %v344
        %v727 = vunpack.c.l.b16 %v345
        %v728 = vunpack.c.l.b16 %v346
        %v729 = vunpack.c.l.b16 %v347
        %v730 = vunpack.c.l.b16 %v348
        %v731 = vunpack.c.l.b16 %v349
        %v732 = vunpack.c.l.b16 %v350
        %v733 = vunpack.c.l.b16 %v351
        %v734 = vunpack.c.l.b16 %v352
        %v735 = vunpack.c.l.b16 %v353
        %v736 = vunpack.c.l.b16 %v354
        %v737 = vunpack.c.l.b16 %v355
        %v738 = vunpack.c.l.b16 %v356
        %v739 = vunpack.c.l.b16 %v357
        %v740 = vunpack.c.l.b16 %v358
        %v741 = vunpack.c.l.b16 %v359
        %v742 = vunpack.c.l.b16 %v360
        %v743 = vunpack.c.l.b16 %v361
        %v744 = vunpack.c.l.b16 %v362
        %v745 = vunpack.c.l.b16 %v363
        %v746 = vunpack.c.l.b16 %v364
        %v747 = vunpack.c.l.b16 %v365
        %v748 = vunpack.c.l.b16 %v366
        %v749 = vunpack.c.l.b16 %v367
        %v750 = vunpack.c.l.b16 %v368
        %v751 = vunpack.c.l.b16 %v369
        %v752 = vunpack.c.l.b16 %v370
        %v753 = vunpack.c.l.b16 %v371
        %v754 = vunpack.c.l.b16 %v372
        %v755 = vunpack.c.l.b16 %v373
        %v756 = vunpack.c.l.b16 %v374
        %v757 = vunpack.c.l.b16 %v375
        %v758 = vunpack.c.l.b16 %v376
        %v759 = vunpack.c.l.b16 %v377
        %v760 = vunpack.c.l.b16 %v378
        %v761 = vunpack.c.l.b16 %v379
        %v762 = vunpack.c.l.b16 %v380
        %v763 = vunpack.c.l.b16 %v381
        %v764 = vunpack.c.l.b16 %v382
        %v765 = vunpack.c.l.b16 %v383
        %v766 = vunpack.c.l.b16 %v384
        %v767 = vunpack.c.l.b16 %v385
        %v768 = vunpack.c.l.b16 %v386
        %v769 = vunpack.c.l.b16 %v387
        %v770 = vunpack.c.l.b16 %v388
        %v771 = vunpack.c.l.b16 %v389
        %v772 = vunpack.c.l.b16 %v390
        %v773 = vunpack.c.l.b16 %v391
        %v774 = vunpack.c.l.b16 %v392
        %v775 = vunpack.c.l.b16 %v393
        %v776 = vunpack.c.l.b16 %v394
        %v777 = vunpack.c.l.b16 %v395
        %v778 = vunpack.c.l.b16 %v396
        %v779 = vunpack.c.l.b16 %v397
        %v780 = vunpack.c.l.b16 %v398
        %v781 = vunpack.c.l.b16 %v399
        %v782 = vunpack.c.l.b16 %v400
        %v783 = vunpack.c.l.b16 %v401
        %v784 = vunpack.c.l.b16 %v402
        %v785 = vpack.c.b16 %v722, %v721
        %v786 = vpack.c.b16 %v724, %v723
        %v787 = vpack.c.b16 %v726, %v725
        %v788 = vpack.c.b16 %v728, %v727
        %v789 = vpack.c.b16 %v730, %v729
        %v790 = vpack.c.b16 %v732, %v731
        %v791 = vpack.c.b16 %v734, %v733
        %v792 = vpack.c.b16 %v736, %v735
        %v793 = vpack.c.b16 %v738, %v737
        %v794 = vpack.c.b16 %v740, %v739
        %v795 = vpack.c.b16 %v742, %v741
        %v796 = vpack.c.b16 %v744, %v743
        %v797 = vpack.c.b16 %v746, %v745
        %v798 = vpack.c.b16 %v748, %v747
        %v799 = vpack.c.b16 %v750, %v749
        %v800 = vpack.c.b16 %v752, %v751
        %v801 = vpack.c.b16 %v754, %v753
        %v802 = vpack.c.b16 %v756, %v755
        %v803 = vpack.c.b16 %v758, %v757
        %v804 = vpack.c.b16 %v760, %v759
        %v805 = vpack.c.b16 %v762, %v761
        %v806 = vpack.c.b16 %v764, %v763
        %v807 = vpack.c.b16 %v766, %v765
        %v808 = vpack.c.b16 %v768, %v767
        %v809 = vpack.c.b16 %v770, %v769
        %v810 = vpack.c.b16 %v772, %v771
        %v811 = vpack.c.b16 %v774, %v773
        %v812 = vpack.c.b16 %v776, %v775
        %v813 = vpack.c.b16 %v778, %v777
        %v814 = vpack.c.b16 %v780, %v779
        %v815 = vpack.c.b16 %v782, %v781
        %v816 = vpack.c.b16 %v784, %v783
        %849 = vmatprep.subr.bf16.mxu0 0
        %850 = vmatpush1.bf16.msra.mxu0 %v785
        %851 = vmatprep.subr.bf16.mxu0 0
        %852 = vmatpush1.bf16.msra.mxu0 %v786
        %853 = vmatprep.subr.bf16.mxu0 0
        %854 = vmatpush1.bf16.msra.mxu0 %v787
        %855 = vmatprep.subr.bf16.mxu0 0
        %856 = vmatpush1.bf16.msra.mxu0 %v788
        %857 = vmatprep.subr.bf16.mxu0 0
        %858 = vmatpush1.bf16.msra.mxu0 %v789
        %859 = vmatprep.subr.bf16.mxu0 0
        %860 = vmatpush1.bf16.msra.mxu0 %v790
        %861 = vmatprep.subr.bf16.mxu0 0
        %862 = vmatpush1.bf16.msra.mxu0 %v791
        %863 = vmatprep.subr.bf16.mxu0 0
        %864 = vmatpush1.bf16.msra.mxu0 %v792
        %865 = vmatprep.subr.bf16.mxu0 0
        %866 = vmatpush1.bf16.msra.mxu0 %v793
        %867 = vmatprep.subr.bf16.mxu0 0
        %868 = vmatpush1.bf16.msra.mxu0 %v794
        %869 = vmatprep.subr.bf16.mxu0 0
        %870 = vmatpush1.bf16.msra.mxu0 %v795
        %871 = vmatprep.subr.bf16.mxu0 0
        %872 = vmatpush1.bf16.msra.mxu0 %v796
        %873 = vmatprep.subr.bf16.mxu0 0
        %874 = vmatpush1.bf16.msra.mxu0 %v797
        %875 = vmatprep.subr.bf16.mxu0 0
        %876 = vmatpush1.bf16.msra.mxu0 %v798
        %877 = vmatprep.subr.bf16.mxu0 0
        %878 = vmatpush1.bf16.msra.mxu0 %v799
        %879 = vmatprep.subr.bf16.mxu0 0
        %880 = vmatpush1.bf16.msra.mxu0 %v800
        %881 = vmatprep.mubr.bf16.mxu0 %v554
        %882 = vmatmul.mubr.bf16.gmra.mrb[0].mxu0 %v553
        %v883 = vpop.f32.mrb[0].mxu0
        %v884 = vadd.f32 0.0, %v883
        %v885 = vpop.f32.mrb[0].mxu0
        %v886 = vpop.f32.mrb[0].mxu0
        %v887 = vadd.f32 0.0, %v886
        %v888 = vpop.f32.mrb[0].mxu0
        %889 = vmatprep.mubr.bf16.mxu0 %v558
        %890 = vmatmul.mubr.bf16.gmra.mrb[0].mxu0 %v557
        %v891 = vpop.f32.mrb[0].mxu0
        %v892 = vadd.f32 0.0, %v891
        %v893 = vpop.f32.mrb[0].mxu0
        %v894 = vpop.f32.mrb[0].mxu0
        %v895 = vadd.f32 0.0, %v894
        %v896 = vpop.f32.mrb[0].mxu0
        %897 = vmatprep.mubr.bf16.mxu0 %v562
        %898 = vmatmul.mubr.bf16.gmra.mrb[0].mxu0 %v561
        %v899 = vpop.f32.mrb[0].mxu0
        %v900 = vadd.f32 0.0, %v899
        %v901 = vpop.f32.mrb[0].mxu0
        %v902 = vpop.f32.mrb[0].mxu0
        %v903 = vadd.f32 0.0, %v902
        %v904 = vpop.f32.mrb[0].mxu0
        %905 = vmatprep.mubr.bf16.mxu0 %v566
        %906 = vmatmul.mubr.bf16.gmra.mrb[0].mxu0 %v565
        %v907 = vpop.f32.mrb[0].mxu0
        %v908 = vadd.f32 0.0, %v907
        %v909 = vpop.f32.mrb[0].mxu0
        %v910 = vpop.f32.mrb[0].mxu0
        %v911 = vadd.f32 0.0, %v910
        %v912 = vpop.f32.mrb[0].mxu0
        %913 = vmatprep.mubr.bf16.mxu0 %v570
        %914 = vmatmul.mubr.bf16.gmra.mrb[0].mxu0 %v569
        %v915 = vpop.f32.mrb[0].mxu0
        %v916 = vadd.f32 0.0, %v915
        %v917 = vpop.f32.mrb[0].mxu0
        %v918 = vpop.f32.mrb[0].mxu0
        %v919 = vadd.f32 0.0, %v918
        %v920 = vpop.f32.mrb[0].mxu0
        %921 = vmatprep.mubr.bf16.mxu0 %v574
        %922 = vmatmul.mubr.bf16.gmra.mrb[0].mxu0 %v573
        %v923 = vpop.f32.mrb[0].mxu0
        %v924 = vadd.f32 0.0, %v923
        %v925 = vpop.f32.mrb[0].mxu0
        %v926 = vpop.f32.mrb[0].mxu0
        %v927 = vadd.f32 0.0, %v926
        %v928 = vpop.f32.mrb[0].mxu0
        %929 = vmatprep.mubr.bf16.mxu0 %v578
        %930 = vmatmul.mubr.bf16.gmra.mrb[0].mxu0 %v577
        %v931 = vpop.f32.mrb[0].mxu0
        %v932 = vadd.f32 0.0, %v931
        %v933 = vpop.f32.mrb[0].mxu0
        %v934 = vpop.f32.mrb[0].mxu0
        %v935 = vadd.f32 0.0, %v934
        %v936 = vpop.f32.mrb[0].mxu0
        %937 = vmatprep.mubr.bf16.mxu0 %v582
        %938 = vmatmul.mubr.bf16.gmra.mrb[0].mxu0 %v581
        %v939 = vpop.f32.mrb[0].mxu0
        %v940 = vadd.f32 0.0, %v939
        %v941 = vpop.f32.mrb[0].mxu0
        %v942 = vpop.f32.mrb[0].mxu0
        %v943 = vadd.f32 0.0, %v942
        %v944 = vpop.f32.mrb[0].mxu0
        %945 = vmatprep.mubr.bf16.mxu0 %v586
        %946 = vmatmul.mubr.bf16.gmra.mrb[0].mxu0 %v585
        %v947 = vpop.f32.mrb[0].mxu0
        %v948 = vadd.f32 0.0, %v947
        %v949 = vpop.f32.mrb[0].mxu0
        %v950 = vpop.f32.mrb[0].mxu0
        %v951 = vadd.f32 0.0, %v950
        %v952 = vpop.f32.mrb[0].mxu0
        %953 = vmatprep.mubr.bf16.mxu0 %v590
        %954 = vmatmul.mubr.bf16.gmra.mrb[0].mxu0 %v589
        %v955 = vpop.f32.mrb[0].mxu0
        %v956 = vadd.f32 0.0, %v955
        %v957 = vpop.f32.mrb[0].mxu0
        %v958 = vpop.f32.mrb[0].mxu0
        %v959 = vadd.f32 0.0, %v958
        %v960 = vpop.f32.mrb[0].mxu0
        %961 = vmatprep.mubr.bf16.mxu0 %v594
        %962 = vmatmul.mubr.bf16.gmra.mrb[0].mxu0 %v593
        %v963 = vpop.f32.mrb[0].mxu0
        %v964 = vadd.f32 0.0, %v963
        %v965 = vpop.f32.mrb[0].mxu0
        %v966 = vpop.f32.mrb[0].mxu0
        %v967 = vadd.f32 0.0, %v966
        %v968 = vpop.f32.mrb[0].mxu0
        %969 = vmatprep.mubr.bf16.mxu0 %v598
        %970 = vmatmul.mubr.bf16.gmra.mrb[0].mxu0 %v597
        %v971 = vpop.f32.mrb[0].mxu0
        %v972 = vadd.f32 0.0, %v971
        %v973 = vpop.f32.mrb[0].mxu0
        %v974 = vpop.f32.mrb[0].mxu0
        %v975 = vadd.f32 0.0, %v974
        %v976 = vpop.f32.mrb[0].mxu0
        %977 = vmatprep.mubr.bf16.mxu0 %v602
        %978 = vmatmul.mubr.bf16.gmra.mrb[0].mxu0 %v601
        %v979 = vpop.f32.mrb[0].mxu0
        %v980 = vadd.f32 0.0, %v979
        %v981 = vpop.f32.mrb[0].mxu0
        %v982 = vpop.f32.mrb[0].mxu0
        %v983 = vpop.f32.mrb[0].mxu0
        %984 = vdwg.mxu0
        %985 = vmatprep.subr.bf16.mxu0 0
        %986 = vmatpush1.bf16.msra.mxu0 %v801
        %987 = vmatprep.subr.bf16.mxu0 0
        %988 = vmatpush1.bf16.msra.mxu0 %v802
        %989 = vmatprep.subr.bf16.mxu0 0
        %990 = vmatpush1.bf16.msra.mxu0 %v803
        %991 = vmatprep.subr.bf16.mxu0 0
        %992 = vmatpush1.bf16.msra.mxu0 %v804
        %993 = vmatprep.subr.bf16.mxu0 0
        %994 = vmatpush1.bf16.msra.mxu0 %v805
        %995 = vmatprep.subr.bf16.mxu0 0
        %996 = vmatpush1.bf16.msra.mxu0 %v806
        %997 = vmatprep.subr.bf16.mxu0 0
        %998 = vmatpush1.bf16.msra.mxu0 %v807
        %999 = vmatprep.subr.bf16.mxu0 0
        %1000 = vmatpush1.bf16.msra.mxu0 %v808
        %1001 = vmatprep.subr.bf16.mxu0 0
        %1002 = vmatpush1.bf16.msra.mxu0 %v809
        %1003 = vmatprep.subr.bf16.mxu0 0
        %1004 = vmatpush1.bf16.msra.mxu0 %v810
        %1005 = vmatprep.subr.bf16.mxu0 0
        %1006 = vmatpush1.bf16.msra.mxu0 %v811
        %1007 = vmatprep.subr.bf16.mxu0 0
        %1008 = vmatpush1.bf16.msra.mxu0 %v812
        %1009 = vmatprep.subr.bf16.mxu0 0
        %1010 = vmatpush1.bf16.msra.mxu0 %v813
        %1011 = vmatprep.subr.bf16.mxu0 0
        %1012 = vmatpush1.bf16.msra.mxu0 %v814
        %1013 = vmatprep.subr.bf16.mxu0 0
        %1014 = vmatpush1.bf16.msra.mxu0 %v815
        %1015 = vmatprep.subr.bf16.mxu0 0
        %1016 = vmatpush1.bf16.msra.mxu0 %v816
        %1017 = vmatprep.mubr.bf16.mxu0 %v556
        %1018 = vmatmul.mubr.bf16.gmra.mrb[0].mxu0 %v555
        %v1019 = vpop.f32.mrb[0].mxu0
        %v1020 = vadd.f32 %v884, %v1019
        %v1021 = vpop.f32.mrb[0].mxu0
        %v1022 = vpop.f32.mrb[0].mxu0
        %v1023 = vadd.f32 %v887, %v1022
        %v1024 = vpop.f32.mrb[0].mxu0
        %1025 = vmatprep.mubr.bf16.mxu0 %v560
        %1026 = vmatmul.mubr.bf16.gmra.mrb[0].mxu0 %v559
        %v1027 = vpop.f32.mrb[0].mxu0
        %v1028 = vadd.f32 %v892, %v1027
        %v1029 = vpop.f32.mrb[0].mxu0
        %v1030 = vpop.f32.mrb[0].mxu0
        %v1031 = vadd.f32 %v895, %v1030
        %v1032 = vpop.f32.mrb[0].mxu0
        %1033 = vmatprep.mubr.bf16.mxu0 %v564
        %1034 = vmatmul.mubr.bf16.gmra.mrb[0].mxu0 %v563
        %v1035 = vpop.f32.mrb[0].mxu0
        %v1036 = vadd.f32 %v900, %v1035
        %v1037 = vpop.f32.mrb[0].mxu0
        %v1038 = vpop.f32.mrb[0].mxu0
        %v1039 = vadd.f32 %v903, %v1038
        %v1040 = vpop.f32.mrb[0].mxu0
        %1041 = vmatprep.mubr.bf16.mxu0 %v568
        %1042 = vmatmul.mubr.bf16.gmra.mrb[0].mxu0 %v567
        %v1043 = vpop.f32.mrb[0].mxu0
        %v1044 = vadd.f32 %v908, %v1043
        %v1045 = vpop.f32.mrb[0].mxu0
        %v1046 = vpop.f32.mrb[0].mxu0
        %v1047 = vadd.f32 %v911, %v1046
        %v1048 = vpop.f32.mrb[0].mxu0
        %1049 = vmatprep.mubr.bf16.mxu0 %v572
        %1050 = vmatmul.mubr.bf16.gmra.mrb[0].mxu0 %v571
        %v1051 = vpop.f32.mrb[0].mxu0
        %v1052 = vadd.f32 %v916, %v1051
        %v1053 = vpop.f32.mrb[0].mxu0
        %v1054 = vpop.f32.mrb[0].mxu0
        %v1055 = vadd.f32 %v919, %v1054
        %v1056 = vpop.f32.mrb[0].mxu0
        %1057 = vmatprep.mubr.bf16.mxu0 %v576
        %1058 = vmatmul.mubr.bf16.gmra.mrb[0].mxu0 %v575
        %v1059 = vpop.f32.mrb[0].mxu0
        %v1060 = vadd.f32 %v924, %v1059
        %v1061 = vpop.f32.mrb[0].mxu0
        %v1062 = vpop.f32.mrb[0].mxu0
        %v1063 = vadd.f32 %v927, %v1062
        %v1064 = vpop.f32.mrb[0].mxu0
        %1065 = vmatprep.mubr.bf16.mxu0 %v580
        %1066 = vmatmul.mubr.bf16.gmra.mrb[0].mxu0 %v579
        %v1067 = vpop.f32.mrb[0].mxu0
        %v1068 = vadd.f32 %v932, %v1067
        %v1069 = vpop.f32.mrb[0].mxu0
        %v1070 = vpop.f32.mrb[0].mxu0
        %v1071 = vadd.f32 %v935, %v1070
        %v1072 = vpop.f32.mrb[0].mxu0
        %1073 = vmatprep.mubr.bf16.mxu0 %v584
        %1074 = vmatmul.mubr.bf16.gmra.mrb[0].mxu0 %v583
        %v1075 = vpop.f32.mrb[0].mxu0
        %v1076 = vadd.f32 %v940, %v1075
        %v1077 = vpop.f32.mrb[0].mxu0
        %v1078 = vpop.f32.mrb[0].mxu0
        %v1079 = vadd.f32 %v943, %v1078
        %v1080 = vpop.f32.mrb[0].mxu0
        %1081 = vmatprep.mubr.bf16.mxu0 %v588
        %1082 = vmatmul.mubr.bf16.gmra.mrb[0].mxu0 %v587
        %v1083 = vpop.f32.mrb[0].mxu0
        %v1084 = vadd.f32 %v948, %v1083
        %v1085 = vpop.f32.mrb[0].mxu0
        %v1086 = vpop.f32.mrb[0].mxu0
        %v1087 = vadd.f32 %v951, %v1086
        %v1088 = vpop.f32.mrb[0].mxu0
        %1089 = vmatprep.mubr.bf16.mxu0 %v592
        %1090 = vmatmul.mubr.bf16.gmra.mrb[0].mxu0 %v591
        %v1091 = vpop.f32.mrb[0].mxu0
        %v1092 = vadd.f32 %v956, %v1091
        %v1093 = vpop.f32.mrb[0].mxu0
        %v1094 = vpop.f32.mrb[0].mxu0
        %v1095 = vadd.f32 %v959, %v1094
        %v1096 = vpop.f32.mrb[0].mxu0
        %1097 = vmatprep.mubr.bf16.mxu0 %v596
        %1098 = vmatmul.mubr.bf16.gmra.mrb[0].mxu0 %v595
        %v1099 = vpop.f32.mrb[0].mxu0
        %v1100 = vadd.f32 %v964, %v1099
        %v1101 = vpop.f32.mrb[0].mxu0
        %v1102 = vpop.f32.mrb[0].mxu0
        %v1103 = vadd.f32 %v967, %v1102
        %v1104 = vpop.f32.mrb[0].mxu0
        %1105 = vmatprep.mubr.bf16.mxu0 %v600
        %1106 = vmatmul.mubr.bf16.gmra.mrb[0].mxu0 %v599
        %v1107 = vpop.f32.mrb[0].mxu0
        %v1108 = vadd.f32 %v972, %v1107
        %v1109 = vpop.f32.mrb[0].mxu0
        %v1110 = vpop.f32.mrb[0].mxu0
        %v1111 = vadd.f32 %v975, %v1110
        %v1112 = vpop.f32.mrb[0].mxu0
        %1113 = vmatprep.mubr.bf16.mxu0 %v604
        %1114 = vmatmul.mubr.bf16.gmra.mrb[0].mxu0 %v603
        %v1115 = vpop.f32.mrb[0].mxu0
        %v1116 = vadd.f32 %v980, %v1115
        %v1117 = vpop.f32.mrb[0].mxu0
        %v1118 = vpop.f32.mrb[0].mxu0
        %v1119 = vpop.f32.mrb[0].mxu0
        %1120 = vdwg.mxu0
        %v1121 = vadd.f32 %v264, %v1020
        %v1122 = vadd.f32 %v265, %v1023
        %v1123 = vadd.f32 %v266, %v1028
        %v1124 = vadd.f32 %v267, %v1031
        %v1125 = vadd.f32 %v268, %v1036
        %v1126 = vadd.f32 %v269, %v1039
        %v1127 = vadd.f32 %v270, %v1044
        %v1128 = vadd.f32 %v271, %v1047
        %v1129 = vadd.f32 %v272, %v1052
        %v1130 = vadd.f32 %v273, %v1055
        %v1131 = vadd.f32 %v274, %v1060
        %v1132 = vadd.f32 %v275, %v1063
        %v1133 = vadd.f32 %v276, %v1068
        %v1134 = vadd.f32 %v277, %v1071
        %v1135 = vadd.f32 %v278, %v1076
        %v1136 = vadd.f32 %v279, %v1079
        %v1137 = vadd.f32 %v280, %v1084
        %v1138 = vadd.f32 %v281, %v1087
        %v1139 = vadd.f32 %v282, %v1092
        %v1140 = vadd.f32 %v283, %v1095
        %v1141 = vadd.f32 %v284, %v1100
        %v1142 = vadd.f32 %v285, %v1103
        %v1143 = vadd.f32 %v286, %v1108
        %v1144 = vadd.f32 %v287, %v1111
        %v1145 = vadd.f32 %v288, %v1116
        %vm1146 = vcmask 261120
        %1147 = vst.msk [vmem:[#allocation2] sm:$0xff] %vm1146, %v1121
        %1148 = vst.msk [vmem:[#allocation2 + $0x8] sm:$0xff] %vm1146, %v1122
        %1149 = vst.msk [vmem:[#allocation2 + $0x10] sm:$0xff] %vm1146, %v1123
        %1150 = vst.msk [vmem:[#allocation2 + $0x18] sm:$0xff] %vm1146, %v1124
        %1151 = vst.msk [vmem:[#allocation2 + $0x20] sm:$0xff] %vm1146, %v1125
        %1152 = vst.msk [vmem:[#allocation2 + $0x28] sm:$0xff] %vm1146, %v1126
        %1153 = vst.msk [vmem:[#allocation2 + $0x30] sm:$0xff] %vm1146, %v1127
        %1154 = vst.msk [vmem:[#allocation2 + $0x38] sm:$0xff] %vm1146, %v1128
        %1155 = vst.msk [vmem:[#allocation2 + $0x40] sm:$0xff] %vm1146, %v1129
        %1156 = vst.msk [vmem:[#allocation2 + $0x48] sm:$0xff] %vm1146, %v1130
        %1157 = vst.msk [vmem:[#allocation2 + $0x50] sm:$0xff] %vm1146, %v1131
        %1158 = vst.msk [vmem:[#allocation2 + $0x58] sm:$0xff] %vm1146, %v1132
        %1159 = vst.msk [vmem:[#allocation2 + $0x60] sm:$0xff] %vm1146, %v1133
        %1160 = vst.msk [vmem:[#allocation2 + $0x68] sm:$0xff] %vm1146, %v1134
        %1161 = vst.msk [vmem:[#allocation2 + $0x70] sm:$0xff] %vm1146, %v1135
        %1162 = vst.msk [vmem:[#allocation2 + $0x78] sm:$0xff] %vm1146, %v1136
        %1163 = vst.msk [vmem:[#allocation2 + $0x80] sm:$0xff] %vm1146, %v1137
        %1164 = vst.msk [vmem:[#allocation2 + $0x88] sm:$0xff] %vm1146, %v1138
        %1165 = vst.msk [vmem:[#allocation2 + $0x90] sm:$0xff] %vm1146, %v1139
        %1166 = vst.msk [vmem:[#allocation2 + $0x98] sm:$0xff] %vm1146, %v1140
        %1167 = vst.msk [vmem:[#allocation2 + $0xa0] sm:$0xff] %vm1146, %v1141
        %1168 = vst.msk [vmem:[#allocation2 + $0xa8] sm:$0xff] %vm1146, %v1142
        %1169 = vst.msk [vmem:[#allocation2 + $0xb0] sm:$0xff] %vm1146, %v1143
        %1170 = vst.msk [vmem:[#allocation2 + $0xb8] sm:$0xff] %vm1146, %v1144
        %1171 = vst.msk [vmem:[#allocation2 + $0xc0] sm:$0xff] %vm1146, %v1145
        %p1172 = scmp.eq.s32.totalorder %s22, 1
        // Predicated region
        $region41: #{tpu_custom_call.1} parent=31 // pred_check
          %p1173 = pneg %p1172
        $region42: #{tpu_custom_call.1} parent=31 // pred_check_branch
          %1175 = sbr.rel (%p1173) target = $region44
        $region43: #{tpu_custom_call.1} parent=31 // pred_region
          %v1176 = vld [vmem:[#allocation2] sm:$0xff]
          %v1177 = vld [vmem:[#allocation2 + $0x8] sm:$0xff]
          %v1178 = vld [vmem:[#allocation2 + $0x10] sm:$0xff]
          %v1179 = vld [vmem:[#allocation2 + $0x18] sm:$0xff]
          %v1180 = vld [vmem:[#allocation2 + $0x20] sm:$0xff]
          %v1181 = vld [vmem:[#allocation2 + $0x28] sm:$0xff]
          %v1182 = vld [vmem:[#allocation2 + $0x30] sm:$0xff]
          %v1183 = vld [vmem:[#allocation2 + $0x38] sm:$0xff]
          %v1184 = vld [vmem:[#allocation2 + $0x40] sm:$0xff]
          %v1185 = vld [vmem:[#allocation2 + $0x48] sm:$0xff]
          %v1186 = vld [vmem:[#allocation2 + $0x50] sm:$0xff]
          %v1187 = vld [vmem:[#allocation2 + $0x58] sm:$0xff]
          %v1188 = vld [vmem:[#allocation2 + $0x60] sm:$0xff]
          %v1189 = vld [vmem:[#allocation2 + $0x68] sm:$0xff]
          %v1190 = vld [vmem:[#allocation2 + $0x70] sm:$0xff]
          %v1191 = vld [vmem:[#allocation2 + $0x78] sm:$0xff]
          %v1192 = vld [vmem:[#allocation2 + $0x80] sm:$0xff]
          %v1193 = vld [vmem:[#allocation2 + $0x88] sm:$0xff]
          %v1194 = vld [vmem:[#allocation2 + $0x90] sm:$0xff]
          %v1195 = vld [vmem:[#allocation2 + $0x98] sm:$0xff]
          %v1196 = vld [vmem:[#allocation2 + $0xa0] sm:$0xff]
          %v1197 = vld [vmem:[#allocation2 + $0xa8] sm:$0xff]
          %v1198 = vld [vmem:[#allocation2 + $0xb0] sm:$0xff]
          %v1199 = vld [vmem:[#allocation2 + $0xb8] sm:$0xff]
          %v1200 = vld [vmem:[#allocation2 + $0xc0] sm:$0xff]
          %v1201 = vld [vmem:[%s2] sm:$0x1]
          %v1203 = vlaneseq
          %v1204 = vshrl.u32 %v1203, 7
          %v1205 = vsub.s32 0, %v1204
          %v1206 = vrot.slane %v1201, %v1205
          %v1208 = vadd.f32 %v1176, %v1206
          %v1209 = vadd.f32 %v1177, %v1206
          %v1210 = vadd.f32 %v1178, %v1206
          %v1211 = vadd.f32 %v1179, %v1206
          %v1212 = vadd.f32 %v1180, %v1206
          %v1213 = vadd.f32 %v1181, %v1206
          %v1214 = vadd.f32 %v1182, %v1206
          %v1215 = vadd.f32 %v1183, %v1206
          %v1216 = vadd.f32 %v1184, %v1206
          %v1217 = vadd.f32 %v1185, %v1206
          %v1218 = vadd.f32 %v1186, %v1206
          %v1219 = vadd.f32 %v1187, %v1206
          %v1220 = vadd.f32 %v1188, %v1206
          %v1221 = vadd.f32 %v1189, %v1206
          %v1222 = vadd.f32 %v1190, %v1206
          %v1223 = vadd.f32 %v1191, %v1206
          %v1224 = vadd.f32 %v1192, %v1206
          %v1225 = vadd.f32 %v1193, %v1206
          %v1226 = vadd.f32 %v1194, %v1206
          %v1227 = vadd.f32 %v1195, %v1206
          %v1228 = vadd.f32 %v1196, %v1206
          %v1229 = vadd.f32 %v1197, %v1206
          %v1230 = vadd.f32 %v1198, %v1206
          %v1231 = vadd.f32 %v1199, %v1206
          %v1232 = vadd.f32 %v1200, %v1206
          %1233 = vst.msk [vmem:[%s231] sm:$0xff] %vm1146, %v1208
          %1234 = vst.msk [vmem:[%s231 + $0x8] sm:$0xff] %vm1146, %v1209
          %1235 = vst.msk [vmem:[%s231 + $0x10] sm:$0xff] %vm1146, %v1210
          %1236 = vst.msk [vmem:[%s231 + $0x18] sm:$0xff] %vm1146, %v1211
          %1237 = vst.msk [vmem:[%s231 + $0x20] sm:$0xff] %vm1146, %v1212
          %1238 = vst.msk [vmem:[%s231 + $0x28] sm:$0xff] %vm1146, %v1213
          %1239 = vst.msk [vmem:[%s231 + $0x30] sm:$0xff] %vm1146, %v1214
          %1240 = vst.msk [vmem:[%s231 + $0x38] sm:$0xff] %vm1146, %v1215
          %1241 = vst.msk [vmem:[%s231 + $0x40] sm:$0xff] %vm1146, %v1216
          %1242 = vst.msk [vmem:[%s231 + $0x48] sm:$0xff] %vm1146, %v1217
          %1243 = vst.msk [vmem:[%s231 + $0x50] sm:$0xff] %vm1146, %v1218
          %1244 = vst.msk [vmem:[%s231 + $0x58] sm:$0xff] %vm1146, %v1219
          %1245 = vst.msk [vmem:[%s231 + $0x60] sm:$0xff] %vm1146, %v1220
          %1246 = vst.msk [vmem:[%s231 + $0x68] sm:$0xff] %vm1146, %v1221
          %1247 = vst.msk [vmem:[%s231 + $0x70] sm:$0xff] %vm1146, %v1222
          %1248 = vst.msk [vmem:[%s231 + $0x78] sm:$0xff] %vm1146, %v1223
          %1249 = vst.msk [vmem:[%s231 + $0x80] sm:$0xff] %vm1146, %v1224
          %1250 = vst.msk [vmem:[%s231 + $0x88] sm:$0xff] %vm1146, %v1225
          %1251 = vst.msk [vmem:[%s231 + $0x90] sm:$0xff] %vm1146, %v1226
          %1252 = vst.msk [vmem:[%s231 + $0x98] sm:$0xff] %vm1146, %v1227
          %1253 = vst.msk [vmem:[%s231 + $0xa0] sm:$0xff] %vm1146, %v1228
          %1254 = vst.msk [vmem:[%s231 + $0xa8] sm:$0xff] %vm1146, %v1229
          %1255 = vst.msk [vmem:[%s231 + $0xb0] sm:$0xff] %vm1146, %v1230
          %1256 = vst.msk [vmem:[%s231 + $0xb8] sm:$0xff] %vm1146, %v1231
          %1257 = vst.msk [vmem:[%s231 + $0xc0] sm:$0xff] %vm1146, %v1232
        $region44: #{tpu_custom_call.1} parent=31 // pred_fallthru
          _
        %s1258 = smul.u32 25, %s21
        %p1259 = scmp.lt.s32.totalorder %s1258, 24
        %s1260 = scalar_select %p1259, %s1258, 24
        %s1261 = smul.addr %s1260, 8
        %s1262 = scalar_lea.vmem %s3, %s1261
        // Predicated region
        $region45: #{tpu_custom_call.1} parent=31 // pred_check
          %p1263 = pneg %p122
        $region46: #{tpu_custom_call.1} parent=31 // pred_check_branch
          %1265 = sbr.rel (%p1263) target = $region48
        $region47: #{tpu_custom_call.1} parent=31 // pred_region
          %s1266 = smul.u32 25, %s21
        $region48: #{tpu_custom_call.1} parent=31 // pred_fallthru
          _
        // Predicated region
        $region49: #{tpu_custom_call.1} parent=31 // pred_check
          %p1267 = pneg %p122
        $region50: #{tpu_custom_call.1} parent=31 // pred_check_branch
          %1269 = sbr.rel (%p1267) target = $region52
        $region51: #{tpu_custom_call.1} parent=31 // pred_region
          %s1270 = smul.u32 25, %s21
          %p1271 = scmp.lt.s32.totalorder %s1270, 24
          %s1272 = scalar_select %p1271, %s1270, 24
          %s1273 = smul.addr %s1272, 8
          %s1274 = scalar_lea.vmem %s3, %s1273
        $region52: #{tpu_custom_call.1} parent=31 // pred_fallthru
          _
      $region32: #{tpu_custom_call.1} parent=5 // pred_fallthru
        _
      %p1275 = scmp.le.s32.totalorder 2, %s12
      // Predicated region
      $region53: #{tpu_custom_call.1} parent=5 // pred_check
        %p1276 = pneg %p1275
      $region54: #{tpu_custom_call.1} parent=5 // pred_check_branch
        %1278 = sbr.rel (%p1276) target = $region56
      $region55: #{tpu_custom_call.1} parent=5 // pred_region
        %s1279 = ssub.s32 %s12, 2
      $region56: #{tpu_custom_call.1} parent=5 // pred_fallthru
        _
    $region6: #{tpu_custom_call.1} parent=1 // loop_footer
      %s16 = sadd.s32 1, %s12
    $region7: #{tpu_custom_call.1} parent=1 // loop_footer_branch
      %11 = sbr.rel target = $region3
    $region8: #{tpu_custom_call.1} parent=1 // loop_exit
      _
    %1280 = vsyncpa [#allocation4], 1
    %s1281 = scalar_lea.sflag [#allocation4], 1
    %1282 = vsyncpa %s1281, 1

</llo_original>
